<compile_context>
chip_gen: v7x
topology: tpu7x:2x2x1
jax: 0.10.0
libtpu: 0.0.40
codegen_flags: <defaults>
</compile_context>

<pallas_src>
import functools

import jax
import jax.numpy as jnp
from jax.experimental import pallas as pl
from jax.experimental.pallas import tpu as pltpu

LN_EPS = 1e-5   # PyTorch nn.LayerNorm default
LANE = 128
SUBLANE = 8


def _round_up(x, m):
    return (x + m - 1) // m * m


def mlp_kernel(x_ref, w1_ref, b1_ref, w2_ref, b2_ref, o_ref, *, d_true):
    # --- LayerNorm statistics in f32 over the TRUE feature width ------------
    # Padded feature columns of x are zero, so sums over the padded width equal
    # sums over the true width; we just divide by d_true.
    x = x_ref[...]                                           # (TB, Dp) f32
    inv_d = jnp.float32(1.0 / d_true)
    mean = jnp.sum(x, axis=-1, keepdims=True) * inv_d        # (TB, 1)
    xc = x - mean
    d_pad = x.shape[-1]
    if d_pad != d_true:                                      # static check
        col = jax.lax.broadcasted_iota(jnp.int32, xc.shape, 1)
        xc = jnp.where(col < d_true, xc, 0.0)                # keep padded lanes = 0
    var = jnp.sum(xc * xc, axis=-1, keepdims=True) * inv_d   # biased, like PyTorch
    ln = xc * jax.lax.rsqrt(var + LN_EPS)                    # gamma/beta folded into W1/b1

    # --- Linear(dim, dim): bf16 MXU operands, f32 accumulation --------------
    h = jnp.dot(ln.astype(jnp.bfloat16), w1_ref[...],
                preferred_element_type=jnp.float32) + b1_ref[...]

    # --- Linear(dim, num_classes), lane-padded class dim --------------------
    logits = jnp.dot(h.astype(jnp.bfloat16), w2_ref[...],
                     preferred_element_type=jnp.float32) + b2_ref[...]

    # --- Dropout (eval: identity) -> ReLU ------------------------------------
    o_ref[...] = jnp.maximum(logits, 0.0).astype(o_ref.dtype)


def prepare_params(gamma, beta, w1, b1, w2, b2):
    """One-time parameter preparation: fold LayerNorm affine into the first
    linear, transpose, zero-pad feature/class dims to lane multiples, cast
    matmul weights to bf16 (weight-stationary)."""
    D = w1.shape[1]
    C = w2.shape[0]
    Dp = _round_up(D, LANE)
    Cp = _round_up(C, LANE)

    gamma = jnp.asarray(gamma, jnp.float32)
    beta = jnp.asarray(beta, jnp.float32)
    w1 = jnp.asarray(w1, jnp.float32)
    b1 = jnp.asarray(b1, jnp.float32)
    w2 = jnp.asarray(w2, jnp.float32)
    b2 = jnp.asarray(b2, jnp.float32)

    # (n*gamma + beta) @ W1^T + b1  ==  n @ (gamma[:,None]*W1^T) + (beta@W1^T + b1)
    w1_fold = gamma[:, None] * w1.T                          # (D, D)
    b1_fold = beta @ w1.T + b1                               # (D,)

    w1_p = jnp.zeros((Dp, Dp), jnp.bfloat16).at[:D, :D].set(w1_fold.astype(jnp.bfloat16))
    b1_p = jnp.zeros((1, Dp), jnp.float32).at[0, :D].set(b1_fold)
    w2_p = jnp.zeros((Dp, Cp), jnp.bfloat16).at[:D, :C].set(w2.T.astype(jnp.bfloat16))
    # NOTE: padded class columns must stay zero (0 logits -> ReLU 0).
    b2_p = jnp.zeros((1, Cp), jnp.float32).at[0, :C].set(b2)

    return {
        "w1_t": w1_p, "b1": b1_p, "w2_t": w2_p, "b2": b2_p,
        "dim": D, "dim_padded": Dp, "num_classes": C,        # python ints (static)
    }


def _vmem_cap_bytes():
    try:
        phys = pltpu.get_tpu_info().vmem_capacity_bytes      # 64 MiB v7x / 128 MiB v5e,v6e
    except Exception:
        phys = 64 << 20                                      # conservative fallback
    return max(16 << 20, int(phys * 3 // 4))                 # leave internal-scratch headroom


def _vmem_limit_bytes(TB, Dp, Cp, out_bytes, weight_buffers):
    weights = weight_buffers * ((Dp * Dp + Dp * Cp) * 2 + (Dp + Cp) * 4)  # bf16 W + f32 b
    tiles = 2 * (TB * Dp * 4 + TB * Cp * out_bytes)          # double-buffered x / out
    interm = TB * (2 * Dp + Cp) * 4                          # ln / h / logits in f32
    need = weights + tiles + interm
    return int(min(max(2 * need, 16 << 20), _vmem_cap_bytes()))


def mlp_forward(x, params, *, block_b=512, out_dtype=jnp.bfloat16, return_padded=False):
    """x: (B, D) -> (B, num_classes) (or padded (Bp, Cp) if return_padded)."""
    B, D = x.shape
    assert D == params["dim"]
    Dp = params["dim_padded"]
    Cp = params["w2_t"].shape[1]
    C = params["num_classes"]

    # Batch tile: multiple of the sublane count, capped at block_b.
    TB = min(block_b, _round_up(B, SUBLANE))
    # Prefer >= 2 batch tiles so the "parallel" axis shards across both v7x TCs.
    if B > SUBLANE and _round_up(B, TB) == TB:
        TB = _round_up((B + 1) // 2, SUBLANE)
    Bp = _round_up(B, TB)
    nb = Bp // TB

    # Keep x in f32 so LayerNorm statistics match PyTorch; bf16 only on MXU operands.
    xf = jnp.asarray(x, jnp.float32)
    if Bp != B or Dp != D:
        xf = jnp.pad(xf, ((0, Bp - B), (0, Dp - D)))

    out_bytes = jnp.dtype(out_dtype).itemsize
    kernel = functools.partial(mlp_kernel, d_true=D)

    flops = 2 * Bp * Dp * Dp + 2 * Bp * Dp * Cp
    bytes_accessed = (Bp * Dp * 4                            # x (f32)
                      + (Dp * Dp + Dp * Cp) * 2              # W1^T, W2^T (bf16)
                      + (Dp + Cp) * 4                        # b1, b2 (f32)
                      + Bp * Cp * out_bytes)                 # output

    def attempt(weight_buffers):
        # Resident operands: constant block index -> single-buffer when supported.
        wkw = {"pipeline_mode": pl.Buffered(1)} if weight_buffers == 1 else {}
        const = lambda i: (0, 0)
        return pl.pallas_call(
            kernel,
            out_shape=jax.ShapeDtypeStruct((Bp, Cp), out_dtype),
            grid=(nb,),
            in_specs=[
                pl.BlockSpec((TB, Dp), lambda i: (i, 0)),    # x: tiled over batch
                pl.BlockSpec((Dp, Dp), const, **wkw),        # folded W1^T (bf16)
                pl.BlockSpec((1, Dp), const, **wkw),         # folded b1   (f32)
                pl.BlockSpec((Dp, Cp), const, **wkw),        # W2^T class-padded (bf16)
                pl.BlockSpec((1, Cp), const, **wkw),         # b2   class-padded (f32)
            ],
            out_specs=pl.BlockSpec((TB, Cp), lambda i: (i, 0)),
            compiler_params=pltpu.CompilerParams(
                dimension_semantics=("parallel",),
                vmem_limit_bytes=_vmem_limit_bytes(TB, Dp, Cp, out_bytes, weight_buffers),
            ),
            cost_estimate=pl.CostEstimate(
                flops=flops, transcendentals=Bp, bytes_accessed=bytes_accessed),
        )(xf, params["w1_t"], params["b1"], params["w2_t"], params["b2"])

    try:
        out_p = attempt(weight_buffers=1)                    # single-buffered weights
    except Exception:
        out_p = attempt(weight_buffers=2)                    # fallback: default pipelining

    if return_padded:
        return out_p                                         # (Bp, Cp): slice lazily downstream
    return out_p[:B, :C]


# ----------------------------- references ---------------------------------

def reference_f32(x, gamma, beta, w1, b1, w2, b2):
    """PyTorch-semantics forward in full f32 (loose check: bf16 matmul operands)."""
    x = x.astype(jnp.float32)
    mean = jnp.mean(x, axis=-1, keepdims=True)
    var = jnp.mean((x - mean) ** 2, axis=-1, keepdims=True)
    ln = (x - mean) * jax.lax.rsqrt(var + LN_EPS) * gamma + beta
    h = ln @ w1.T + b1
    logits = h @ w2.T + b2
    return jnp.maximum(logits, 0.0)


def reference_bf16_matched(x, params):
    """Mirrors the kernel's numerics (folded gamma/beta, bf16 operands, f32 accum)."""
    D = params["dim"]
    C = params["num_classes"]
    xf = jnp.asarray(x, jnp.float32)
    mean = jnp.mean(xf, axis=-1, keepdims=True)
    var = jnp.mean((xf - mean) ** 2, axis=-1, keepdims=True)
    ln = (xf - mean) * jax.lax.rsqrt(var + LN_EPS)
    ln = ln.astype(jnp.bfloat16).astype(jnp.float32)
    h = ln @ params["w1_t"][:D, :D].astype(jnp.float32) + params["b1"][:, :D]
    h = h.astype(jnp.bfloat16).astype(jnp.float32)
    logits = h @ params["w2_t"][:D, :C].astype(jnp.float32) + params["b2"][:, :C]
    return jnp.maximum(logits, 0.0)


if __name__ == "__main__":
    batch, dim, num_classes = 8, 32, 5

    key = jax.random.PRNGKey(0)
    kx, kw1, kb1, kw2, kb2 = jax.random.split(key, 5)

    x = jax.random.normal(kx, (batch, dim), dtype=jnp.float32)

    # Deterministic synthetic parameters (shapes follow nn.LayerNorm / nn.Linear).
    gamma = jnp.ones((dim,), jnp.float32)
    beta = jnp.zeros((dim,), jnp.float32)
    lim1 = 1.0 / (dim ** 0.5)
    w1 = jax.random.uniform(kw1, (dim, dim), jnp.float32, -lim1, lim1)
    b1 = jax.random.uniform(kb1, (dim,), jnp.float32, -lim1, lim1)
    w2 = jax.random.uniform(kw2, (num_classes, dim), jnp.float32, -lim1, lim1)
    b2 = jax.random.uniform(kb2, (num_classes,), jnp.float32, -lim1, lim1)

    params = prepare_params(gamma, beta, w1, b1, w2, b2)     # one-time prep

    out = mlp_forward(x, params)
    out = jax.block_until_ready(out)
    assert out.shape == (batch, num_classes)
    out_f32 = jnp.asarray(out, jnp.float32)

    # Tight check against a reference that mirrors the kernel's numerics.
    ref_tight = reference_bf16_matched(x, params)
    assert jnp.allclose(out_f32, ref_tight, atol=1.5e-2, rtol=1.5e-2), \
        "mismatch vs bf16-matched reference"

    # Loose check against the full-f32 PyTorch-semantics reference.
    ref_f32 = reference_f32(x, gamma, beta, w1, b1, w2, b2)
    assert jnp.allclose(out_f32, ref_f32, atol=7e-2, rtol=7e-2), \
        "mismatch vs f32 reference"

    print("KERNEL_OK")
</pallas_src>

<mosaic_0001>
module attributes {stable_mosaic.version = 11 : i64} {
  func.func @mlp_kernel(%arg0: i32, %arg1: memref<8x128xf32, #tpu.memory_space<vmem>>, %arg2: memref<128x128xbf16, #tpu.memory_space<vmem>>, %arg3: memref<1x128xf32, #tpu.memory_space<vmem>>, %arg4: memref<128x128xbf16, #tpu.memory_space<vmem>>, %arg5: memref<1x128xf32, #tpu.memory_space<vmem>>, %arg6: memref<8x128xbf16, #tpu.memory_space<vmem>>) attributes {dimension_semantics = [#tpu.dimension_semantics<parallel>], iteration_bounds = array<i64: 1>, scalar_prefetch = 0 : i64, scratch_operands = 0 : i64, tpu.core_type = #tpu.core_type<tc>, window_params = [{transform_indices = @transform_0, window_bounds = array<i64: 8, 128>}, {pipeline_mode = #tpu.pipeline_mode<synchronous>, transform_indices = @transform_1, window_bounds = array<i64: 128, 128>}, {pipeline_mode = #tpu.pipeline_mode<synchronous>, transform_indices = @transform_2, window_bounds = array<i64: 1, 128>}, {pipeline_mode = #tpu.pipeline_mode<synchronous>, transform_indices = @transform_3, window_bounds = array<i64: 128, 128>}, {pipeline_mode = #tpu.pipeline_mode<synchronous>, transform_indices = @transform_4, window_bounds = array<i64: 1, 128>}, {transform_indices = @transform_5, window_bounds = array<i64: 8, 128>}]} {
    %c0 = arith.constant 0 : index
    %c0_0 = arith.constant 0 : index
    %0 = vector.load %arg1[%c0, %c0_0] : memref<8x128xf32, #tpu.memory_space<vmem>>, vector<8x128xf32>
    %cst = arith.constant dense<0.000000e+00> : vector<8xf32>
    %1 = vector.multi_reduction <add>, %0, %cst [1] : vector<8x128xf32> to vector<8xf32>
    %2 = vector.shape_cast %1 : vector<8xf32> to vector<8x1xf32>
    %cst_1 = arith.constant 3.125000e-02 : f32
    %3 = vector.broadcast %cst_1 : f32 to vector<8x1xf32>
    %4 = arith.mulf %2, %3 : vector<8x1xf32>
    %5 = vector.broadcast %4 : vector<8x1xf32> to vector<8x128xf32>
    %6 = arith.subf %0, %5 : vector<8x128xf32>
    %7 = tpu.iota {dimensions = array<i32: 1>} : vector<8x128xi32>
    %c32_i32 = arith.constant 32 : i32
    %8 = vector.broadcast %c32_i32 : i32 to vector<8x128xi32>
    %9 = arith.cmpi slt, %7, %8 : vector<8x128xi32>
    %cst_2 = arith.constant 0.000000e+00 : f32
    %10 = vector.broadcast %cst_2 : f32 to vector<8x128xf32>
    %11 = arith.select %9, %6, %10 : vector<8x128xi1>, vector<8x128xf32>
    %12 = arith.mulf %11, %11 : vector<8x128xf32>
    %cst_3 = arith.constant dense<0.000000e+00> : vector<8xf32>
    %13 = vector.multi_reduction <add>, %12, %cst_3 [1] : vector<8x128xf32> to vector<8xf32>
    %14 = vector.shape_cast %13 : vector<8xf32> to vector<8x1xf32>
    %cst_4 = arith.constant 3.125000e-02 : f32
    %15 = vector.broadcast %cst_4 : f32 to vector<8x1xf32>
    %16 = arith.mulf %14, %15 : vector<8x1xf32>
    %cst_5 = arith.constant 9.99999974E-6 : f32
    %17 = vector.broadcast %cst_5 : f32 to vector<8x1xf32>
    %18 = arith.addf %16, %17 : vector<8x1xf32>
    %19 = math.rsqrt %18 : vector<8x1xf32>
    %20 = vector.broadcast %19 : vector<8x1xf32> to vector<8x128xf32>
    %21 = arith.mulf %11, %20 : vector<8x128xf32>
    %22 = arith.truncf %21 : vector<8x128xf32> to vector<8x128xbf16>
    %c0_6 = arith.constant 0 : index
    %c0_7 = arith.constant 0 : index
    %23 = vector.load %arg2[%c0_6, %c0_7] : memref<128x128xbf16, #tpu.memory_space<vmem>>, vector<128x128xbf16>
    %cst_8 = arith.constant dense<0.000000e+00> : vector<8x128xf32>
    %24 = tpu.matmul %22, %23, %cst_8 {dimension_numbers = #tpu.dot_dimension_numbers<[1], [0], [0], [1], [0, 0, 1, 1], [], []>} : vector<8x128xbf16>, vector<128x128xbf16>, vector<8x128xf32> -> vector<8x128xf32>
    %c0_9 = arith.constant 0 : index
    %c0_10 = arith.constant 0 : index
    %25 = vector.load %arg3[%c0_9, %c0_10] : memref<1x128xf32, #tpu.memory_space<vmem>>, vector<1x128xf32>
    %26 = vector.broadcast %25 : vector<1x128xf32> to vector<8x128xf32>
    %27 = arith.addf %24, %26 : vector<8x128xf32>
    %28 = arith.truncf %27 : vector<8x128xf32> to vector<8x128xbf16>
    %c0_11 = arith.constant 0 : index
    %c0_12 = arith.constant 0 : index
    %29 = vector.load %arg4[%c0_11, %c0_12] : memref<128x128xbf16, #tpu.memory_space<vmem>>, vector<128x128xbf16>
    %cst_13 = arith.constant dense<0.000000e+00> : vector<8x128xf32>
    %30 = tpu.matmul %28, %29, %cst_13 {dimension_numbers = #tpu.dot_dimension_numbers<[1], [0], [0], [1], [0, 0, 1, 1], [], []>} : vector<8x128xbf16>, vector<128x128xbf16>, vector<8x128xf32> -> vector<8x128xf32>
    %c0_14 = arith.constant 0 : index
    %c0_15 = arith.constant 0 : index
    %31 = vector.load %arg5[%c0_14, %c0_15] : memref<1x128xf32, #tpu.memory_space<vmem>>, vector<1x128xf32>
    %32 = vector.broadcast %31 : vector<1x128xf32> to vector<8x128xf32>
    %33 = arith.addf %30, %32 : vector<8x128xf32>
    %cst_16 = arith.constant 0.000000e+00 : f32
    %34 = vector.broadcast %cst_16 : f32 to vector<8x128xf32>
    %35 = arith.maximumf %33, %34 : vector<8x128xf32>
    %36 = arith.truncf %35 : vector<8x128xf32> to vector<8x128xbf16>
    %c0_17 = arith.constant 0 : index
    %c0_18 = arith.constant 0 : index
    %37 = vector.load %arg6[%c0_17, %c0_18] : memref<8x128xbf16, #tpu.memory_space<vmem>>, vector<8x128xbf16>
    tpu.vector_store %arg6[%c0_17, %c0_18], %36 {strides = array<i32>} : memref<8x128xbf16, #tpu.memory_space<vmem>>, vector<8x128xbf16>,
    return
  }
  func.func @transform_0(%arg0: i32) -> (i32, i32) {
    %c0_i32 = arith.constant 0 : i32
    %c0_i32_0 = arith.constant 0 : i32
    return %arg0, %c0_i32 : i32, i32
  }
  func.func @transform_1(%arg0: i32) -> (i32, i32) {
    %c0_i32 = arith.constant 0 : i32
    %c0_i32_0 = arith.constant 0 : i32
    %c0_i32_1 = arith.constant 0 : i32
    return %c0_i32, %c0_i32_0 : i32, i32
  }
  func.func @transform_2(%arg0: i32) -> (i32, i32) {
    %c0_i32 = arith.constant 0 : i32
    %c0_i32_0 = arith.constant 0 : i32
    %c0_i32_1 = arith.constant 0 : i32
    return %c0_i32, %c0_i32_0 : i32, i32
  }
  func.func @transform_3(%arg0: i32) -> (i32, i32) {
    %c0_i32 = arith.constant 0 : i32
    %c0_i32_0 = arith.constant 0 : i32
    %c0_i32_1 = arith.constant 0 : i32
    return %c0_i32, %c0_i32_0 : i32, i32
  }
  func.func @transform_4(%arg0: i32) -> (i32, i32) {
    %c0_i32 = arith.constant 0 : i32
    %c0_i32_0 = arith.constant 0 : i32
    %c0_i32_1 = arith.constant 0 : i32
    return %c0_i32, %c0_i32_0 : i32, i32
  }
  func.func @transform_5(%arg0: i32) -> (i32, i32) {
    %c0_i32 = arith.constant 0 : i32
    %c0_i32_0 = arith.constant 0 : i32
    return %arg0, %c0_i32 : i32, i32
  }
}

module attributes {stable_mosaic.version = 11 : i64} {
  func.func @mlp_kernel(%arg0: i32, %arg1: memref<8x128xf32, #tpu.memory_space<vmem>>, %arg2: memref<128x128xbf16, #tpu.memory_space<vmem>>, %arg3: memref<1x128xf32, #tpu.memory_space<vmem>>, %arg4: memref<128x128xbf16, #tpu.memory_space<vmem>>, %arg5: memref<1x128xf32, #tpu.memory_space<vmem>>, %arg6: memref<8x128xbf16, #tpu.memory_space<vmem>>) attributes {dimension_semantics = [#tpu.dimension_semantics<parallel>], iteration_bounds = array<i64: 1>, scalar_prefetch = 0 : i64, scratch_operands = 0 : i64, tpu.core_type = #tpu.core_type<tc>, window_params = [{transform_indices = @transform_0, window_bounds = array<i64: 8, 128>}, {pipeline_mode = #tpu.pipeline_mode<synchronous>, transform_indices = @transform_1, window_bounds = array<i64: 128, 128>}, {pipeline_mode = #tpu.pipeline_mode<synchronous>, transform_indices = @transform_2, window_bounds = array<i64: 1, 128>}, {pipeline_mode = #tpu.pipeline_mode<synchronous>, transform_indices = @transform_3, window_bounds = array<i64: 128, 128>}, {pipeline_mode = #tpu.pipeline_mode<synchronous>, transform_indices = @transform_4, window_bounds = array<i64: 1, 128>}, {transform_indices = @transform_5, window_bounds = array<i64: 8, 128>}]} {
    %c0 = arith.constant 0 : index
    %c0_0 = arith.constant 0 : index
    %0 = vector.load %arg1[%c0, %c0_0] : memref<8x128xf32, #tpu.memory_space<vmem>>, vector<8x128xf32>
    %cst = arith.constant dense<0.000000e+00> : vector<8xf32>
    %1 = vector.multi_reduction <add>, %0, %cst [1] : vector<8x128xf32> to vector<8xf32>
    %2 = vector.shape_cast %1 : vector<8xf32> to vector<8x1xf32>
    %cst_1 = arith.constant 3.125000e-02 : f32
    %3 = vector.broadcast %cst_1 : f32 to vector<8x1xf32>
    %4 = arith.mulf %2, %3 : vector<8x1xf32>
    %5 = vector.broadcast %4 : vector<8x1xf32> to vector<8x128xf32>
    %6 = arith.subf %0, %5 : vector<8x128xf32>
    %7 = tpu.iota {dimensions = array<i32: 1>} : vector<8x128xi32>
    %c32_i32 = arith.constant 32 : i32
    %8 = vector.broadcast %c32_i32 : i32 to vector<8x128xi32>
    %9 = arith.cmpi slt, %7, %8 : vector<8x128xi32>
    %cst_2 = arith.constant 0.000000e+00 : f32
    %10 = vector.broadcast %cst_2 : f32 to vector<8x128xf32>
    %11 = arith.select %9, %6, %10 : vector<8x128xi1>, vector<8x128xf32>
    %12 = arith.mulf %11, %11 : vector<8x128xf32>
    %cst_3 = arith.constant dense<0.000000e+00> : vector<8xf32>
    %13 = vector.multi_reduction <add>, %12, %cst_3 [1] : vector<8x128xf32> to vector<8xf32>
    %14 = vector.shape_cast %13 : vector<8xf32> to vector<8x1xf32>
    %cst_4 = arith.constant 3.125000e-02 : f32
    %15 = vector.broadcast %cst_4 : f32 to vector<8x1xf32>
    %16 = arith.mulf %14, %15 : vector<8x1xf32>
    %cst_5 = arith.constant 9.99999974E-6 : f32
    %17 = vector.broadcast %cst_5 : f32 to vector<8x1xf32>
    %18 = arith.addf %16, %17 : vector<8x1xf32>
    %19 = math.rsqrt %18 : vector<8x1xf32>
    %20 = vector.broadcast %19 : vector<8x1xf32> to vector<8x128xf32>
    %21 = arith.mulf %11, %20 : vector<8x128xf32>
    %22 = arith.truncf %21 : vector<8x128xf32> to vector<8x128xbf16>
    %c0_6 = arith.constant 0 : index
    %c0_7 = arith.constant 0 : index
    %23 = vector.load %arg2[%c0_6, %c0_7] : memref<128x128xbf16, #tpu.memory_space<vmem>>, vector<128x128xbf16>
    %cst_8 = arith.constant dense<0.000000e+00> : vector<8x128xf32>
    %24 = tpu.matmul %22, %23, %cst_8 {dimension_numbers = #tpu.dot_dimension_numbers<[1], [0], [0], [1], [0, 0, 1, 1], [], []>} : vector<8x128xbf16>, vector<128x128xbf16>, vector<8x128xf32> -> vector<8x128xf32>
    %c0_9 = arith.constant 0 : index
    %c0_10 = arith.constant 0 : index
    %25 = vector.load %arg3[%c0_9, %c0_10] : memref<1x128xf32, #tpu.memory_space<vmem>>, vector<1x128xf32>
    %26 = vector.broadcast %25 : vector<1x128xf32> to vector<8x128xf32>
    %27 = arith.addf %24, %26 : vector<8x128xf32>
    %28 = arith.truncf %27 : vector<8x128xf32> to vector<8x128xbf16>
    %c0_11 = arith.constant 0 : index
    %c0_12 = arith.constant 0 : index
    %29 = vector.load %arg4[%c0_11, %c0_12] : memref<128x128xbf16, #tpu.memory_space<vmem>>, vector<128x128xbf16>
    %cst_13 = arith.constant dense<0.000000e+00> : vector<8x128xf32>
    %30 = tpu.matmul %28, %29, %cst_13 {dimension_numbers = #tpu.dot_dimension_numbers<[1], [0], [0], [1], [0, 0, 1, 1], [], []>} : vector<8x128xbf16>, vector<128x128xbf16>, vector<8x128xf32> -> vector<8x128xf32>
    %c0_14 = arith.constant 0 : index
    %c0_15 = arith.constant 0 : index
    %31 = vector.load %arg5[%c0_14, %c0_15] : memref<1x128xf32, #tpu.memory_space<vmem>>, vector<1x128xf32>
    %32 = vector.broadcast %31 : vector<1x128xf32> to vector<8x128xf32>
    %33 = arith.addf %30, %32 : vector<8x128xf32>
    %cst_16 = arith.constant 0.000000e+00 : f32
    %34 = vector.broadcast %cst_16 : f32 to vector<8x128xf32>
    %35 = arith.maximumf %33, %34 : vector<8x128xf32>
    %36 = arith.truncf %35 : vector<8x128xf32> to vector<8x128xbf16>
    %c0_17 = arith.constant 0 : index
    %c0_18 = arith.constant 0 : index
    %37 = vector.load %arg6[%c0_17, %c0_18] : memref<8x128xbf16, #tpu.memory_space<vmem>>, vector<8x128xbf16>
    tpu.vector_store %arg6[%c0_17, %c0_18], %36 {strides = array<i32>} : memref<8x128xbf16, #tpu.memory_space<vmem>>, vector<8x128xbf16>,
    return
  }
  func.func @transform_0(%arg0: i32) -> (i32, i32) {
    %c0_i32 = arith.constant 0 : i32
    %c0_i32_0 = arith.constant 0 : i32
    return %arg0, %c0_i32 : i32, i32
  }
  func.func @transform_1(%arg0: i32) -> (i32, i32) {
    %c0_i32 = arith.constant 0 : i32
    %c0_i32_0 = arith.constant 0 : i32
    %c0_i32_1 = arith.constant 0 : i32
    return %c0_i32, %c0_i32_0 : i32, i32
  }
  func.func @transform_2(%arg0: i32) -> (i32, i32) {
    %c0_i32 = arith.constant 0 : i32
    %c0_i32_0 = arith.constant 0 : i32
    %c0_i32_1 = arith.constant 0 : i32
    return %c0_i32, %c0_i32_0 : i32, i32
  }
  func.func @transform_3(%arg0: i32) -> (i32, i32) {
    %c0_i32 = arith.constant 0 : i32
    %c0_i32_0 = arith.constant 0 : i32
    %c0_i32_1 = arith.constant 0 : i32
    return %c0_i32, %c0_i32_0 : i32, i32
  }
  func.func @transform_4(%arg0: i32) -> (i32, i32) {
    %c0_i32 = arith.constant 0 : i32
    %c0_i32_0 = arith.constant 0 : i32
    %c0_i32_1 = arith.constant 0 : i32
    return %c0_i32, %c0_i32_0 : i32, i32
  }
  func.func @transform_5(%arg0: i32) -> (i32, i32) {
    %c0_i32 = arith.constant 0 : i32
    %c0_i32_0 = arith.constant 0 : i32
    return %arg0, %c0_i32 : i32, i32
  }
}

</mosaic_0001>

<llo_original>
// kernel: tpu_custom_call.1
$region0: #{tpu_custom_call.1}
  #allocation0 [shape = 'u32[]', space=smem, size = 0x4, offset = 0x4, fixed_abs, tag = 'smem constant byte address 0x4 - core index']
  #allocation1 [shape = 'u32[144,128]{1,0:T(1,128)}', space=vmem, size = 0x12000, scoped, tag = 'internal scratch']
  %s0 = inlined_call_operand.hbm [shape: f32[8,128], index: 0, kind: input, shape index: {}]
  %s1 = inlined_call_operand.hbm [shape: bf16[128,128], index: 1, kind: input, shape index: {}]
  %s2 = inlined_call_operand.vmem [shape: f32[1,128], index: 2, kind: input, shape index: {}]
  %s3 = inlined_call_operand.hbm [shape: bf16[128,128], index: 3, kind: input, shape index: {}]
  %s4 = inlined_call_operand.vmem [shape: f32[1,128], index: 4, kind: input, shape index: {}]
  %s5 = inlined_call_operand.hbm [shape: bf16[8,128], index: 5, kind: output, shape index: {}]
  %s6 = sld [smem:[#allocation0]]
  $region42: #{tpu_custom_call.1} parent=0
    _
  %s8 = ssub.s32 1, %s6
  %s9 = scalar_select 0, %s8, %s6
  $region1: #{tpu_custom_call.1} parent=0
    #allocation2 [shape = 'u8[4096]{0}', space=vmem, size = 0x1000, scoped, tag = 'input window, operand 0, single buffered']
    #allocation3 [shape = 's32[1]{0}', space=sflag, size = 0x4, scoped, tag = 'scoped memory for tpu_custom_call.1']
    #allocation4 [shape = 's32[1]{0}', space=sflag, size = 0x4, scoped, tag = 'scoped memory for tpu_custom_call.1']
    #allocation5 [shape = 'u8[32768]{0}', space=vmem, size = 0x8000, scoped, tag = 'input window, operand 1, single buffered']
    #allocation6 [shape = 's32[1]{0}', space=sflag, size = 0x4, scoped, tag = 'scoped memory for tpu_custom_call.1']
    #allocation7 [shape = 'u8[32768]{0}', space=vmem, size = 0x8000, scoped, tag = 'input window, operand 3, single buffered']
    #allocation8 [shape = 'u8[2048]{0}', space=vmem, size = 0x800, scoped, tag = 'output window, operand 0, single buffered']
    %10 = vsyncpa [#allocation3], 0
    %11 = vsyncpa [#allocation6], 0
    %12 = vsyncpa [#allocation4], 0
    // Predicated region
    $region2: #{tpu_custom_call.1} parent=1 // pred_check
      _
    $region3: #{tpu_custom_call.1} parent=1 // pred_check_branch
      %14 = sbr.rel (0) target = $region5
    $region4: #{tpu_custom_call.1} parent=1 // pred_region
      %s16 = ssub.s32 128, 128
      %17 = vsyncadd [#allocation3], %s16
      %s19 = sshll.u32 [#allocation2], 4
      %s20 = int_to_ptr.vmem [resolvable:$true] %s19
      %22 = dma.hbm_to_vmem [thread:$0]  %s0, 128, %s20, [#allocation3]
    $region5: #{tpu_custom_call.1} parent=1 // pred_fallthru
      _
    // Predicated region
    $region6: #{tpu_custom_call.1} parent=1 // pred_check
      _
    $region7: #{tpu_custom_call.1} parent=1 // pred_check_branch
      %24 = sbr.rel (0) target = $region9
    $region8: #{tpu_custom_call.1} parent=1 // pred_region
      %s26 = ssub.s32 1024, 1024
      %27 = vsyncadd [#allocation6], %s26
      %s28 = sshll.u32 [#allocation5], 4
      %s29 = int_to_ptr.vmem [resolvable:$true] %s28
      %34 = dma.hbm_to_vmem [thread:$0]  %s1, 1024, %s29, [#allocation6], 64, 64, 4
    $region9: #{tpu_custom_call.1} parent=1 // pred_fallthru
      _
    // Predicated region
    $region10: #{tpu_custom_call.1} parent=1 // pred_check
      _
    $region11: #{tpu_custom_call.1} parent=1 // pred_check_branch
      %36 = sbr.rel (0) target = $region13
    $region12: #{tpu_custom_call.1} parent=1 // pred_region
      _
    $region13: #{tpu_custom_call.1} parent=1 // pred_fallthru
      _
    // Predicated region
    $region14: #{tpu_custom_call.1} parent=1 // pred_check
      _
    $region15: #{tpu_custom_call.1} parent=1 // pred_check_branch
      %38 = sbr.rel (0) target = $region17
    $region16: #{tpu_custom_call.1} parent=1 // pred_region
      %s40 = ssub.s32 1024, 1024
      %41 = vsyncadd [#allocation6], %s40
      %s42 = sshll.u32 [#allocation7], 4
      %s43 = int_to_ptr.vmem [resolvable:$true] %s42
      %48 = dma.hbm_to_vmem [thread:$0]  %s3, 1024, %s43, [#allocation6], 64, 64, 4
    $region17: #{tpu_custom_call.1} parent=1 // pred_fallthru
      _
    // Predicated region
    $region18: #{tpu_custom_call.1} parent=1 // pred_check
      _
    $region19: #{tpu_custom_call.1} parent=1 // pred_check_branch
      %50 = sbr.rel (0) target = $region21
    $region20: #{tpu_custom_call.1} parent=1 // pred_region
      _
    $region21: #{tpu_custom_call.1} parent=1 // pred_fallthru
      _
    // Predicated region
    $region22: #{tpu_custom_call.1} parent=1 // pred_check
      _
    $region23: #{tpu_custom_call.1} parent=1 // pred_check_branch
      %52 = sbr.rel (0) target = $region25
    $region24: #{tpu_custom_call.1} parent=1 // pred_region
      %53 = dma.done [#allocation3], 128
    $region25: #{tpu_custom_call.1} parent=1 // pred_fallthru
      _
    // Predicated region
    $region26: #{tpu_custom_call.1} parent=1 // pred_check
      _
    $region27: #{tpu_custom_call.1} parent=1 // pred_check_branch
      %55 = sbr.rel (0) target = $region29
    $region28: #{tpu_custom_call.1} parent=1 // pred_region
      %56 = dma.done [#allocation6], 1024
    $region29: #{tpu_custom_call.1} parent=1 // pred_fallthru
      _
    // Predicated region
    $region30: #{tpu_custom_call.1} parent=1 // pred_check
      _
    $region31: #{tpu_custom_call.1} parent=1 // pred_check_branch
      %58 = sbr.rel (0) target = $region33
    $region32: #{tpu_custom_call.1} parent=1 // pred_region
      %59 = dma.done [#allocation6], 1024
    $region33: #{tpu_custom_call.1} parent=1 // pred_fallthru
      _
    %v61 = vld [vmem:[#allocation2] sm:$0xff]
    %62 = vadd.xlane.f32.xlu0 %v61
    %v63 = vpop.xlane.xlu0 %62
    %v64 = vmul.f32 %v63, 0.03125
    %v65 = vsub.f32 %v61, %v64
    %v66 = vlaneseq
    %v67 = vand.u32 %v66, 127
    %vm68 = vcmp.lt.s32.totalorder %v67, 32
    %v69 = vsel %vm68, %v65, 0.0
    %v70 = vmul.f32 %v69, %v69
    %71 = vadd.xlane.f32.xlu0 %v70
    %v72 = vpop.xlane.xlu0 %71
    %v73 = vmul.f32 %v72, 0.03125
    %v74 = vadd.f32 %v73, 1e-05
    %v75 = vrsqrt.pop %v74
    %v76 = vmul.f32 %v69, %v75
    %v77 = vpack.c.bf16 %v76, %v76
    %v78 = vld [vmem:[#allocation5] sm:$0xf]
    %v79 = vld [vmem:[#allocation5 + $0x4] sm:$0xf]
    %v80 = vld [vmem:[#allocation5 + $0x8] sm:$0xf]
    %v81 = vld [vmem:[#allocation5 + $0xc] sm:$0xf]
    %v82 = vld [vmem:[#allocation5 + $0x10] sm:$0xf]
    %v83 = vld [vmem:[#allocation5 + $0x14] sm:$0xf]
    %v84 = vld [vmem:[#allocation5 + $0x18] sm:$0xf]
    %v85 = vld [vmem:[#allocation5 + $0x1c] sm:$0xf]
    %v86 = vld [vmem:[#allocation5 + $0x20] sm:$0xf]
    %v87 = vld [vmem:[#allocation5 + $0x24] sm:$0xf]
    %v88 = vld [vmem:[#allocation5 + $0x28] sm:$0xf]
    %v89 = vld [vmem:[#allocation5 + $0x2c] sm:$0xf]
    %v90 = vld [vmem:[#allocation5 + $0x30] sm:$0xf]
    %v91 = vld [vmem:[#allocation5 + $0x34] sm:$0xf]
    %v92 = vld [vmem:[#allocation5 + $0x38] sm:$0xf]
    %v93 = vld [vmem:[#allocation5 + $0x3c] sm:$0xf]
    %v94 = vld [vmem:[%s2] sm:$0x1]
    %v96 = vlaneseq
    %v97 = vshrl.u32 %v96, 7
    %v98 = vsub.s32 0, %v97
    %v99 = vrot.slane %v94, %v98
    %v117 = vunpack.c.l.b16 %v78
    %v118 = vunpack.c.l.b16 %v79
    %v119 = vunpack.c.l.b16 %v80
    %v120 = vunpack.c.l.b16 %v81
    %v121 = vunpack.c.l.b16 %v82
    %v122 = vunpack.c.l.b16 %v83
    %v123 = vunpack.c.l.b16 %v84
    %v124 = vunpack.c.l.b16 %v85
    %v125 = vunpack.c.l.b16 %v86
    %v126 = vunpack.c.l.b16 %v87
    %v127 = vunpack.c.l.b16 %v88
    %v128 = vunpack.c.l.b16 %v89
    %v129 = vunpack.c.l.b16 %v90
    %v130 = vunpack.c.l.b16 %v91
    %v131 = vunpack.c.l.b16 %v92
    %v132 = vunpack.c.l.b16 %v93
    %v133 = vpack.c.b16 %v118, %v117
    %v134 = vpack.c.b16 %v120, %v119
    %v135 = vpack.c.b16 %v122, %v121
    %v136 = vpack.c.b16 %v124, %v123
    %v137 = vpack.c.b16 %v126, %v125
    %v138 = vpack.c.b16 %v128, %v127
    %v139 = vpack.c.b16 %v130, %v129
    %v140 = vpack.c.b16 %v132, %v131
    %149 = vmatprep.subr.bf16.mxu0 0
    %150 = vmatpush1.bf16.msra.mxu0 %v133
    %151 = vmatprep.subr.bf16.mxu0 0
    %152 = vmatpush1.bf16.msra.mxu0 %v134
    %153 = vmatprep.subr.bf16.mxu0 0
    %154 = vmatpush1.bf16.msra.mxu0 %v135
    %155 = vmatprep.subr.bf16.mxu0 0
    %156 = vmatpush1.bf16.msra.mxu0 %v136
    %157 = vmatprep.subr.bf16.mxu0 0
    %158 = vmatpush1.bf16.msra.mxu0 %v137
    %159 = vmatprep.subr.bf16.mxu0 0
    %160 = vmatpush1.bf16.msra.mxu0 %v138
    %161 = vmatprep.subr.bf16.mxu0 0
    %162 = vmatpush1.bf16.msra.mxu0 %v139
    %163 = vmatprep.subr.bf16.mxu0 0
    %164 = vmatpush1.bf16.msra.mxu0 %v140
    %165 = vmatprep.subr.bf16.mxu0 0
    %166 = vmatpush1.bf16.msra.mxu0 0
    %167 = vmatprep.subr.bf16.mxu0 0
    %168 = vmatpush1.bf16.msra.mxu0 0
    %169 = vmatprep.subr.bf16.mxu0 0
    %170 = vmatpush1.bf16.msra.mxu0 0
    %171 = vmatprep.subr.bf16.mxu0 0
    %172 = vmatpush1.bf16.msra.mxu0 0
    %173 = vmatprep.subr.bf16.mxu0 0
    %174 = vmatpush1.bf16.msra.mxu0 0
    %175 = vmatprep.subr.bf16.mxu0 0
    %176 = vmatpush1.bf16.msra.mxu0 0
    %177 = vmatprep.subr.bf16.mxu0 0
    %178 = vmatpush1.bf16.msra.mxu0 0
    %179 = vmatprep.subr.bf16.mxu0 0
    %180 = vmatpush1.bf16.msra.mxu0 0
    %181 = vmatprep.mubr.bf16.mxu0 0
    %182 = vmatmul.mubr.bf16.gmra.mrb[0].mxu0 %v77
    %v183 = vpop.f32.mrb[0].mxu0
    %v184 = vadd.f32 %v99, %v183
    %v185 = vpop.f32.mrb[0].mxu0
    %v186 = vpop.f32.mrb[0].mxu0
    %v187 = vpop.f32.mrb[0].mxu0
    %188 = vdwg.mxu0
    %v189 = vpack.c.bf16 %v184, %v184
    %v190 = vld [vmem:[#allocation7] sm:$0xf]
    %v191 = vld [vmem:[#allocation7 + $0x4] sm:$0xf]
    %v192 = vld [vmem:[#allocation7 + $0x8] sm:$0xf]
    %v193 = vld [vmem:[#allocation7 + $0xc] sm:$0xf]
    %v194 = vld [vmem:[#allocation7 + $0x10] sm:$0xf]
    %v195 = vld [vmem:[#allocation7 + $0x14] sm:$0xf]
    %v196 = vld [vmem:[#allocation7 + $0x18] sm:$0xf]
    %v197 = vld [vmem:[#allocation7 + $0x1c] sm:$0xf]
    %v198 = vld [vmem:[#allocation7 + $0x20] sm:$0xf]
    %v199 = vld [vmem:[#allocation7 + $0x24] sm:$0xf]
    %v200 = vld [vmem:[#allocation7 + $0x28] sm:$0xf]
    %v201 = vld [vmem:[#allocation7 + $0x2c] sm:$0xf]
    %v202 = vld [vmem:[#allocation7 + $0x30] sm:$0xf]
    %v203 = vld [vmem:[#allocation7 + $0x34] sm:$0xf]
    %v204 = vld [vmem:[#allocation7 + $0x38] sm:$0xf]
    %v205 = vld [vmem:[#allocation7 + $0x3c] sm:$0xf]
    %v206 = vld [vmem:[%s4] sm:$0x1]
    %v208 = vlaneseq
    %v209 = vshrl.u32 %v208, 7
    %v210 = vsub.s32 0, %v209
    %v211 = vrot.slane %v206, %v210
    %v229 = vunpack.c.l.b16 %v190
    %v230 = vunpack.c.l.b16 %v191
    %v231 = vunpack.c.l.b16 %v192
    %v232 = vunpack.c.l.b16 %v193
    %v233 = vunpack.c.l.b16 %v194
    %v234 = vunpack.c.l.b16 %v195
    %v235 = vunpack.c.l.b16 %v196
    %v236 = vunpack.c.l.b16 %v197
    %v237 = vunpack.c.l.b16 %v198
    %v238 = vunpack.c.l.b16 %v199
    %v239 = vunpack.c.l.b16 %v200
    %v240 = vunpack.c.l.b16 %v201
    %v241 = vunpack.c.l.b16 %v202
    %v242 = vunpack.c.l.b16 %v203
    %v243 = vunpack.c.l.b16 %v204
    %v244 = vunpack.c.l.b16 %v205
    %v245 = vpack.c.b16 %v230, %v229
    %v246 = vpack.c.b16 %v232, %v231
    %v247 = vpack.c.b16 %v234, %v233
    %v248 = vpack.c.b16 %v236, %v235
    %v249 = vpack.c.b16 %v238, %v237
    %v250 = vpack.c.b16 %v240, %v239
    %v251 = vpack.c.b16 %v242, %v241
    %v252 = vpack.c.b16 %v244, %v243
    %261 = vmatprep.subr.bf16.mxu0 0
    %262 = vmatpush1.bf16.msra.mxu0 %v245
    %263 = vmatprep.subr.bf16.mxu0 0
    %264 = vmatpush1.bf16.msra.mxu0 %v246
    %265 = vmatprep.subr.bf16.mxu0 0
    %266 = vmatpush1.bf16.msra.mxu0 %v247
    %267 = vmatprep.subr.bf16.mxu0 0
    %268 = vmatpush1.bf16.msra.mxu0 %v248
    %269 = vmatprep.subr.bf16.mxu0 0
    %270 = vmatpush1.bf16.msra.mxu0 %v249
    %271 = vmatprep.subr.bf16.mxu0 0
    %272 = vmatpush1.bf16.msra.mxu0 %v250
    %273 = vmatprep.subr.bf16.mxu0 0
    %274 = vmatpush1.bf16.msra.mxu0 %v251
    %275 = vmatprep.subr.bf16.mxu0 0
    %276 = vmatpush1.bf16.msra.mxu0 %v252
    %277 = vmatprep.subr.bf16.mxu0 0
    %278 = vmatpush1.bf16.msra.mxu0 0
    %279 = vmatprep.subr.bf16.mxu0 0
    %280 = vmatpush1.bf16.msra.mxu0 0
    %281 = vmatprep.subr.bf16.mxu0 0
    %282 = vmatpush1.bf16.msra.mxu0 0
    %283 = vmatprep.subr.bf16.mxu0 0
    %284 = vmatpush1.bf16.msra.mxu0 0
    %285 = vmatprep.subr.bf16.mxu0 0
    %286 = vmatpush1.bf16.msra.mxu0 0
    %287 = vmatprep.subr.bf16.mxu0 0
    %288 = vmatpush1.bf16.msra.mxu0 0
    %289 = vmatprep.subr.bf16.mxu0 0
    %290 = vmatpush1.bf16.msra.mxu0 0
    %291 = vmatprep.subr.bf16.mxu0 0
    %292 = vmatpush1.bf16.msra.mxu0 0
    %293 = vmatprep.mubr.bf16.mxu0 0
    %294 = vmatmul.mubr.bf16.gmra.mrb[0].mxu0 %v189
    %v295 = vpop.f32.mrb[0].mxu0
    %v296 = vadd.f32 %v211, %v295
    %v297 = vpop.f32.mrb[0].mxu0
    %v298 = vpop.f32.mrb[0].mxu0
    %v299 = vpop.f32.mrb[0].mxu0
    %300 = vdwg.mxu0
    %v301 = vmax.f32 %v296, 0.0
    %v302 = vpack.c.bf16 %v301, %v301
    %303 = vst [vmem:[#allocation8] sm:$0xf] %v302
    // Predicated region
    $region34: #{tpu_custom_call.1} parent=1 // pred_check
      _
    $region35: #{tpu_custom_call.1} parent=1 // pred_check_branch
      %305 = sbr.rel (0) target = $region37
    $region36: #{tpu_custom_call.1} parent=1 // pred_region
      %s307 = ssub.s32 64, 64
      %308 = vsyncadd [#allocation4], %s307
      %s310 = sshll.u32 [#allocation8], 4
      %s311 = int_to_ptr.vmem [resolvable:$true] %s310
      %313 = dma.vmem_to_hbm [thread:$0]  %s311, 64, %s5, [#allocation4]
    $region37: #{tpu_custom_call.1} parent=1 // pred_fallthru
      _
    // Predicated region
    $region38: #{tpu_custom_call.1} parent=1 // pred_check
      _
    $region39: #{tpu_custom_call.1} parent=1 // pred_check_branch
      %315 = sbr.rel (0) target = $region41
    $region40: #{tpu_custom_call.1} parent=1 // pred_region
      %316 = dma.done [#allocation4], 64
    $region41: #{tpu_custom_call.1} parent=1 // pred_fallthru
      _
    %317 = vsyncpa [#allocation3], 1
    %318 = vsyncpa [#allocation6], 1
    %319 = vsyncpa [#allocation4], 1

// kernel: tpu_custom_call.1
$region0: #{tpu_custom_call.1}
  #allocation0 [shape = 'u32[]', space=smem, size = 0x4, offset = 0x4, fixed_abs, tag = 'smem constant byte address 0x4 - core index']
  #allocation1 [shape = 'u32[144,128]{1,0:T(1,128)}', space=vmem, size = 0x12000, scoped, tag = 'internal scratch']
  %s0 = inlined_call_operand.hbm [shape: f32[8,128], index: 0, kind: input, shape index: {}]
  %s1 = inlined_call_operand.hbm [shape: bf16[128,128], index: 1, kind: input, shape index: {}]
  %s2 = inlined_call_operand.vmem [shape: f32[1,128], index: 2, kind: input, shape index: {}]
  %s3 = inlined_call_operand.hbm [shape: bf16[128,128], index: 3, kind: input, shape index: {}]
  %s4 = inlined_call_operand.vmem [shape: f32[1,128], index: 4, kind: input, shape index: {}]
  %s5 = inlined_call_operand.hbm [shape: bf16[8,128], index: 5, kind: output, shape index: {}]
  %s6 = sld [smem:[#allocation0]]
  $region42: #{tpu_custom_call.1} parent=0
    _
  %s8 = ssub.s32 1, %s6
  %s9 = scalar_select 0, %s8, %s6
  $region1: #{tpu_custom_call.1} parent=0
    #allocation2 [shape = 'u8[4096]{0}', space=vmem, size = 0x1000, scoped, tag = 'input window, operand 0, single buffered']
    #allocation3 [shape = 's32[1]{0}', space=sflag, size = 0x4, scoped, tag = 'scoped memory for tpu_custom_call.1']
    #allocation4 [shape = 's32[1]{0}', space=sflag, size = 0x4, scoped, tag = 'scoped memory for tpu_custom_call.1']
    #allocation5 [shape = 'u8[32768]{0}', space=vmem, size = 0x8000, scoped, tag = 'input window, operand 1, single buffered']
    #allocation6 [shape = 's32[1]{0}', space=sflag, size = 0x4, scoped, tag = 'scoped memory for tpu_custom_call.1']
    #allocation7 [shape = 'u8[32768]{0}', space=vmem, size = 0x8000, scoped, tag = 'input window, operand 3, single buffered']
    #allocation8 [shape = 'u8[2048]{0}', space=vmem, size = 0x800, scoped, tag = 'output window, operand 0, single buffered']
    %10 = vsyncpa [#allocation3], 0
    %11 = vsyncpa [#allocation6], 0
    %12 = vsyncpa [#allocation4], 0
    // Predicated region
    $region2: #{tpu_custom_call.1} parent=1 // pred_check
      _
    $region3: #{tpu_custom_call.1} parent=1 // pred_check_branch
      %14 = sbr.rel (0) target = $region5
    $region4: #{tpu_custom_call.1} parent=1 // pred_region
      %s16 = ssub.s32 128, 128
      %17 = vsyncadd [#allocation3], %s16
      %s19 = sshll.u32 [#allocation2], 4
      %s20 = int_to_ptr.vmem [resolvable:$true] %s19
      %22 = dma.hbm_to_vmem [thread:$0]  %s0, 128, %s20, [#allocation3]
    $region5: #{tpu_custom_call.1} parent=1 // pred_fallthru
      _
    // Predicated region
    $region6: #{tpu_custom_call.1} parent=1 // pred_check
      _
    $region7: #{tpu_custom_call.1} parent=1 // pred_check_branch
      %24 = sbr.rel (0) target = $region9
    $region8: #{tpu_custom_call.1} parent=1 // pred_region
      %s26 = ssub.s32 1024, 1024
      %27 = vsyncadd [#allocation6], %s26
      %s28 = sshll.u32 [#allocation5], 4
      %s29 = int_to_ptr.vmem [resolvable:$true] %s28
      %34 = dma.hbm_to_vmem [thread:$0]  %s1, 1024, %s29, [#allocation6], 64, 64, 4
    $region9: #{tpu_custom_call.1} parent=1 // pred_fallthru
      _
    // Predicated region
    $region10: #{tpu_custom_call.1} parent=1 // pred_check
      _
    $region11: #{tpu_custom_call.1} parent=1 // pred_check_branch
      %36 = sbr.rel (0) target = $region13
    $region12: #{tpu_custom_call.1} parent=1 // pred_region
      _
    $region13: #{tpu_custom_call.1} parent=1 // pred_fallthru
      _
    // Predicated region
    $region14: #{tpu_custom_call.1} parent=1 // pred_check
      _
    $region15: #{tpu_custom_call.1} parent=1 // pred_check_branch
      %38 = sbr.rel (0) target = $region17
    $region16: #{tpu_custom_call.1} parent=1 // pred_region
      %s40 = ssub.s32 1024, 1024
      %41 = vsyncadd [#allocation6], %s40
      %s42 = sshll.u32 [#allocation7], 4
      %s43 = int_to_ptr.vmem [resolvable:$true] %s42
      %48 = dma.hbm_to_vmem [thread:$0]  %s3, 1024, %s43, [#allocation6], 64, 64, 4
    $region17: #{tpu_custom_call.1} parent=1 // pred_fallthru
      _
    // Predicated region
    $region18: #{tpu_custom_call.1} parent=1 // pred_check
      _
    $region19: #{tpu_custom_call.1} parent=1 // pred_check_branch
      %50 = sbr.rel (0) target = $region21
    $region20: #{tpu_custom_call.1} parent=1 // pred_region
      _
    $region21: #{tpu_custom_call.1} parent=1 // pred_fallthru
      _
    // Predicated region
    $region22: #{tpu_custom_call.1} parent=1 // pred_check
      _
    $region23: #{tpu_custom_call.1} parent=1 // pred_check_branch
      %52 = sbr.rel (0) target = $region25
    $region24: #{tpu_custom_call.1} parent=1 // pred_region
      %53 = dma.done [#allocation3], 128
    $region25: #{tpu_custom_call.1} parent=1 // pred_fallthru
      _
    // Predicated region
    $region26: #{tpu_custom_call.1} parent=1 // pred_check
      _
    $region27: #{tpu_custom_call.1} parent=1 // pred_check_branch
      %55 = sbr.rel (0) target = $region29
    $region28: #{tpu_custom_call.1} parent=1 // pred_region
      %56 = dma.done [#allocation6], 1024
    $region29: #{tpu_custom_call.1} parent=1 // pred_fallthru
      _
    // Predicated region
    $region30: #{tpu_custom_call.1} parent=1 // pred_check
      _
    $region31: #{tpu_custom_call.1} parent=1 // pred_check_branch
      %58 = sbr.rel (0) target = $region33
    $region32: #{tpu_custom_call.1} parent=1 // pred_region
      %59 = dma.done [#allocation6], 1024
    $region33: #{tpu_custom_call.1} parent=1 // pred_fallthru
      _
    %v61 = vld [vmem:[#allocation2] sm:$0xff]
    %62 = vadd.xlane.f32.xlu0 %v61
    %v63 = vpop.xlane.xlu0 %62
    %v64 = vmul.f32 %v63, 0.03125
    %v65 = vsub.f32 %v61, %v64
    %v66 = vlaneseq
    %v67 = vand.u32 %v66, 127
    %vm68 = vcmp.lt.s32.totalorder %v67, 32
    %v69 = vsel %vm68, %v65, 0.0
    %v70 = vmul.f32 %v69, %v69
    %71 = vadd.xlane.f32.xlu0 %v70
    %v72 = vpop.xlane.xlu0 %71
    %v73 = vmul.f32 %v72, 0.03125
    %v74 = vadd.f32 %v73, 1e-05
    %v75 = vrsqrt.pop %v74
    %v76 = vmul.f32 %v69, %v75
    %v77 = vpack.c.bf16 %v76, %v76
    %v78 = vld [vmem:[#allocation5] sm:$0xf]
    %v79 = vld [vmem:[#allocation5 + $0x4] sm:$0xf]
    %v80 = vld [vmem:[#allocation5 + $0x8] sm:$0xf]
    %v81 = vld [vmem:[#allocation5 + $0xc] sm:$0xf]
    %v82 = vld [vmem:[#allocation5 + $0x10] sm:$0xf]
    %v83 = vld [vmem:[#allocation5 + $0x14] sm:$0xf]
    %v84 = vld [vmem:[#allocation5 + $0x18] sm:$0xf]
    %v85 = vld [vmem:[#allocation5 + $0x1c] sm:$0xf]
    %v86 = vld [vmem:[#allocation5 + $0x20] sm:$0xf]
    %v87 = vld [vmem:[#allocation5 + $0x24] sm:$0xf]
    %v88 = vld [vmem:[#allocation5 + $0x28] sm:$0xf]
    %v89 = vld [vmem:[#allocation5 + $0x2c] sm:$0xf]
    %v90 = vld [vmem:[#allocation5 + $0x30] sm:$0xf]
    %v91 = vld [vmem:[#allocation5 + $0x34] sm:$0xf]
    %v92 = vld [vmem:[#allocation5 + $0x38] sm:$0xf]
    %v93 = vld [vmem:[#allocation5 + $0x3c] sm:$0xf]
    %v94 = vld [vmem:[%s2] sm:$0x1]
    %v96 = vlaneseq
    %v97 = vshrl.u32 %v96, 7
    %v98 = vsub.s32 0, %v97
    %v99 = vrot.slane %v94, %v98
    %v117 = vunpack.c.l.b16 %v78
    %v118 = vunpack.c.l.b16 %v79
    %v119 = vunpack.c.l.b16 %v80
    %v120 = vunpack.c.l.b16 %v81
    %v121 = vunpack.c.l.b16 %v82
    %v122 = vunpack.c.l.b16 %v83
    %v123 = vunpack.c.l.b16 %v84
    %v124 = vunpack.c.l.b16 %v85
    %v125 = vunpack.c.l.b16 %v86
    %v126 = vunpack.c.l.b16 %v87
    %v127 = vunpack.c.l.b16 %v88
    %v128 = vunpack.c.l.b16 %v89
    %v129 = vunpack.c.l.b16 %v90
    %v130 = vunpack.c.l.b16 %v91
    %v131 = vunpack.c.l.b16 %v92
    %v132 = vunpack.c.l.b16 %v93
    %v133 = vpack.c.b16 %v118, %v117
    %v134 = vpack.c.b16 %v120, %v119
    %v135 = vpack.c.b16 %v122, %v121
    %v136 = vpack.c.b16 %v124, %v123
    %v137 = vpack.c.b16 %v126, %v125
    %v138 = vpack.c.b16 %v128, %v127
    %v139 = vpack.c.b16 %v130, %v129
    %v140 = vpack.c.b16 %v132, %v131
    %149 = vmatprep.subr.bf16.mxu0 0
    %150 = vmatpush1.bf16.msra.mxu0 %v133
    %151 = vmatprep.subr.bf16.mxu0 0
    %152 = vmatpush1.bf16.msra.mxu0 %v134
    %153 = vmatprep.subr.bf16.mxu0 0
    %154 = vmatpush1.bf16.msra.mxu0 %v135
    %155 = vmatprep.subr.bf16.mxu0 0
    %156 = vmatpush1.bf16.msra.mxu0 %v136
    %157 = vmatprep.subr.bf16.mxu0 0
    %158 = vmatpush1.bf16.msra.mxu0 %v137
    %159 = vmatprep.subr.bf16.mxu0 0
    %160 = vmatpush1.bf16.msra.mxu0 %v138
    %161 = vmatprep.subr.bf16.mxu0 0
    %162 = vmatpush1.bf16.msra.mxu0 %v139
    %163 = vmatprep.subr.bf16.mxu0 0
    %164 = vmatpush1.bf16.msra.mxu0 %v140
    %165 = vmatprep.subr.bf16.mxu0 0
    %166 = vmatpush1.bf16.msra.mxu0 0
    %167 = vmatprep.subr.bf16.mxu0 0
    %168 = vmatpush1.bf16.msra.mxu0 0
    %169 = vmatprep.subr.bf16.mxu0 0
    %170 = vmatpush1.bf16.msra.mxu0 0
    %171 = vmatprep.subr.bf16.mxu0 0
    %172 = vmatpush1.bf16.msra.mxu0 0
    %173 = vmatprep.subr.bf16.mxu0 0
    %174 = vmatpush1.bf16.msra.mxu0 0
    %175 = vmatprep.subr.bf16.mxu0 0
    %176 = vmatpush1.bf16.msra.mxu0 0
    %177 = vmatprep.subr.bf16.mxu0 0
    %178 = vmatpush1.bf16.msra.mxu0 0
    %179 = vmatprep.subr.bf16.mxu0 0
    %180 = vmatpush1.bf16.msra.mxu0 0
    %181 = vmatprep.mubr.bf16.mxu0 0
    %182 = vmatmul.mubr.bf16.gmra.mrb[0].mxu0 %v77
    %v183 = vpop.f32.mrb[0].mxu0
    %v184 = vadd.f32 %v99, %v183
    %v185 = vpop.f32.mrb[0].mxu0
    %v186 = vpop.f32.mrb[0].mxu0
    %v187 = vpop.f32.mrb[0].mxu0
    %188 = vdwg.mxu0
    %v189 = vpack.c.bf16 %v184, %v184
    %v190 = vld [vmem:[#allocation7] sm:$0xf]
    %v191 = vld [vmem:[#allocation7 + $0x4] sm:$0xf]
    %v192 = vld [vmem:[#allocation7 + $0x8] sm:$0xf]
    %v193 = vld [vmem:[#allocation7 + $0xc] sm:$0xf]
    %v194 = vld [vmem:[#allocation7 + $0x10] sm:$0xf]
    %v195 = vld [vmem:[#allocation7 + $0x14] sm:$0xf]
    %v196 = vld [vmem:[#allocation7 + $0x18] sm:$0xf]
    %v197 = vld [vmem:[#allocation7 + $0x1c] sm:$0xf]
    %v198 = vld [vmem:[#allocation7 + $0x20] sm:$0xf]
    %v199 = vld [vmem:[#allocation7 + $0x24] sm:$0xf]
    %v200 = vld [vmem:[#allocation7 + $0x28] sm:$0xf]
    %v201 = vld [vmem:[#allocation7 + $0x2c] sm:$0xf]
    %v202 = vld [vmem:[#allocation7 + $0x30] sm:$0xf]
    %v203 = vld [vmem:[#allocation7 + $0x34] sm:$0xf]
    %v204 = vld [vmem:[#allocation7 + $0x38] sm:$0xf]
    %v205 = vld [vmem:[#allocation7 + $0x3c] sm:$0xf]
    %v206 = vld [vmem:[%s4] sm:$0x1]
    %v208 = vlaneseq
    %v209 = vshrl.u32 %v208, 7
    %v210 = vsub.s32 0, %v209
    %v211 = vrot.slane %v206, %v210
    %v229 = vunpack.c.l.b16 %v190
    %v230 = vunpack.c.l.b16 %v191
    %v231 = vunpack.c.l.b16 %v192
    %v232 = vunpack.c.l.b16 %v193
    %v233 = vunpack.c.l.b16 %v194
    %v234 = vunpack.c.l.b16 %v195
    %v235 = vunpack.c.l.b16 %v196
    %v236 = vunpack.c.l.b16 %v197
    %v237 = vunpack.c.l.b16 %v198
    %v238 = vunpack.c.l.b16 %v199
    %v239 = vunpack.c.l.b16 %v200
    %v240 = vunpack.c.l.b16 %v201
    %v241 = vunpack.c.l.b16 %v202
    %v242 = vunpack.c.l.b16 %v203
    %v243 = vunpack.c.l.b16 %v204
    %v244 = vunpack.c.l.b16 %v205
    %v245 = vpack.c.b16 %v230, %v229
    %v246 = vpack.c.b16 %v232, %v231
    %v247 = vpack.c.b16 %v234, %v233
    %v248 = vpack.c.b16 %v236, %v235
    %v249 = vpack.c.b16 %v238, %v237
    %v250 = vpack.c.b16 %v240, %v239
    %v251 = vpack.c.b16 %v242, %v241
    %v252 = vpack.c.b16 %v244, %v243
    %261 = vmatprep.subr.bf16.mxu0 0
    %262 = vmatpush1.bf16.msra.mxu0 %v245
    %263 = vmatprep.subr.bf16.mxu0 0
    %264 = vmatpush1.bf16.msra.mxu0 %v246
    %265 = vmatprep.subr.bf16.mxu0 0
    %266 = vmatpush1.bf16.msra.mxu0 %v247
    %267 = vmatprep.subr.bf16.mxu0 0
    %268 = vmatpush1.bf16.msra.mxu0 %v248
    %269 = vmatprep.subr.bf16.mxu0 0
    %270 = vmatpush1.bf16.msra.mxu0 %v249
    %271 = vmatprep.subr.bf16.mxu0 0
    %272 = vmatpush1.bf16.msra.mxu0 %v250
    %273 = vmatprep.subr.bf16.mxu0 0
    %274 = vmatpush1.bf16.msra.mxu0 %v251
    %275 = vmatprep.subr.bf16.mxu0 0
    %276 = vmatpush1.bf16.msra.mxu0 %v252
    %277 = vmatprep.subr.bf16.mxu0 0
    %278 = vmatpush1.bf16.msra.mxu0 0
    %279 = vmatprep.subr.bf16.mxu0 0
    %280 = vmatpush1.bf16.msra.mxu0 0
    %281 = vmatprep.subr.bf16.mxu0 0
    %282 = vmatpush1.bf16.msra.mxu0 0
    %283 = vmatprep.subr.bf16.mxu0 0
    %284 = vmatpush1.bf16.msra.mxu0 0
    %285 = vmatprep.subr.bf16.mxu0 0
    %286 = vmatpush1.bf16.msra.mxu0 0
    %287 = vmatprep.subr.bf16.mxu0 0
    %288 = vmatpush1.bf16.msra.mxu0 0
    %289 = vmatprep.subr.bf16.mxu0 0
    %290 = vmatpush1.bf16.msra.mxu0 0
    %291 = vmatprep.subr.bf16.mxu0 0
    %292 = vmatpush1.bf16.msra.mxu0 0
    %293 = vmatprep.mubr.bf16.mxu0 0
    %294 = vmatmul.mubr.bf16.gmra.mrb[0].mxu0 %v189
    %v295 = vpop.f32.mrb[0].mxu0
    %v296 = vadd.f32 %v211, %v295
    %v297 = vpop.f32.mrb[0].mxu0
    %v298 = vpop.f32.mrb[0].mxu0
    %v299 = vpop.f32.mrb[0].mxu0
    %300 = vdwg.mxu0
    %v301 = vmax.f32 %v296, 0.0
    %v302 = vpack.c.bf16 %v301, %v301
    %303 = vst [vmem:[#allocation8] sm:$0xf] %v302
    // Predicated region
    $region34: #{tpu_custom_call.1} parent=1 // pred_check
      _
    $region35: #{tpu_custom_call.1} parent=1 // pred_check_branch
      %305 = sbr.rel (0) target = $region37
    $region36: #{tpu_custom_call.1} parent=1 // pred_region
      %s307 = ssub.s32 64, 64
      %308 = vsyncadd [#allocation4], %s307
      %s310 = sshll.u32 [#allocation8], 4
      %s311 = int_to_ptr.vmem [resolvable:$true] %s310
      %313 = dma.vmem_to_hbm [thread:$0]  %s311, 64, %s5, [#allocation4]
    $region37: #{tpu_custom_call.1} parent=1 // pred_fallthru
      _
    // Predicated region
    $region38: #{tpu_custom_call.1} parent=1 // pred_check
      _
    $region39: #{tpu_custom_call.1} parent=1 // pred_check_branch
      %315 = sbr.rel (0) target = $region41
    $region40: #{tpu_custom_call.1} parent=1 // pred_region
      %316 = dma.done [#allocation4], 64
    $region41: #{tpu_custom_call.1} parent=1 // pred_fallthru
      _
    %317 = vsyncpa [#allocation3], 1
    %318 = vsyncpa [#allocation6], 1
    %319 = vsyncpa [#allocation4], 1

</llo_original>
